<compile_context>
chip_gen: v7x
topology: tpu7x:2x2x1
jax: 0.10.0
libtpu: 0.0.40
codegen_flags: <defaults>
</compile_context>

<pallas_src>
import functools

import jax
import jax.numpy as jnp
from jax.experimental import pallas as pl
from jax.experimental.pallas import tpu as pltpu


def mixnet_kernel(s_ref, w1_ref, b1_ref, wh_ref, bh_ref, out_ref):
    # Hidden layer: (TM, K) @ (K, H), bias + ReLU in f32.
    x = jnp.dot(s_ref[...], w1_ref[...], preferred_element_type=jnp.float32)
    x = jnp.maximum(x + b1_ref[...], 0.0)

    # Fused heads: (TM, H) @ (H, N+1) + (1, N+1).
    y = jnp.dot(x.astype(wh_ref.dtype), wh_ref[...],
                preferred_element_type=jnp.float32) + bh_ref[...]

    # abs() on the first N columns (the mixing weights); last column is the bias head.
    n_w = out_ref.shape[-1] - 1
    col = jax.lax.broadcasted_iota(jnp.int32, y.shape, 1)
    y = jnp.where(col < n_w, jnp.abs(y), y)

    out_ref[...] = y.astype(out_ref.dtype)


def mixnet_forward(states, params, *, tm=512, compute_dtype=jnp.bfloat16):
    """states: (B, T, N, S). Returns (|w|: (B,T,N,1) f32, b: (B,T,1,1) f32)."""
    B, T, N, S = states.shape
    M = B * T
    K = N * S
    w1, b1, w2, b2, w3, b3 = params
    H = w1.shape[1]
    NO = N + 1  # fused head width

    # Fuse the two heads; keep biases in f32 (bias add / ReLU / abs done in f32).
    w1c = w1.astype(compute_dtype)
    b1c = b1.astype(jnp.float32)
    wh = jnp.concatenate([w2, w3], axis=1).astype(compute_dtype)   # (H, N+1)
    bh = jnp.concatenate([b2, b3], axis=1).astype(jnp.float32)     # (1, N+1)

    states2d = states.reshape(M, K).astype(compute_dtype)

    # Tile choice: as large as allowed (cap `tm`), but keep >= 2 grid steps
    # when M permits so the v7x megacore can shard the row grid. Round to a
    # multiple of 8 sublanes; pad the row axis up to a whole number of tiles.
    tm_eff = max(8, min(int(tm), pl.next_power_of_2(pl.cdiv(M, 2))))
    tm_eff = ((tm_eff + 7) // 8) * 8
    n_tiles = pl.cdiv(M, tm_eff)
    M_pad = n_tiles * tm_eff
    if M_pad != M:
        states2d = jnp.pad(states2d, ((0, M_pad - M), (0, 0)))

    row_tile = lambda i: (i, 0)     # activations / outputs: tile along rows
    full = lambda i: (0, 0)         # weights / biases: same full block every step

    in_bytes = states2d.dtype.itemsize
    cost = pl.CostEstimate(
        flops=2 * M_pad * K * H + 2 * M_pad * H * NO,
        transcendentals=0,
        bytes_accessed=(M_pad * K * in_bytes          # states read
                        + M_pad * NO * 4              # fused output write
                        + (K * H + H * NO) * in_bytes # weights
                        + (H + NO) * 4),              # biases
    )

    out = pl.pallas_call(
        mixnet_kernel,
        out_shape=jax.ShapeDtypeStruct((M_pad, NO), jnp.float32),
        grid_spec=pltpu.PrefetchScalarGridSpec(
            num_scalar_prefetch=0,
            grid=(n_tiles,),
            in_specs=[
                pl.BlockSpec((tm_eff, K), row_tile),   # states
                pl.BlockSpec((K, H), full),            # f_v weight
                pl.BlockSpec((1, H), full),            # f_v bias
                pl.BlockSpec((H, NO), full),           # fused w_v|b_v weight
                pl.BlockSpec((1, NO), full),           # fused w_v|b_v bias
            ],
            out_specs=pl.BlockSpec((tm_eff, NO), row_tile),
        ),
        compiler_params=pltpu.CompilerParams(
            dimension_semantics=("parallel",)),
        cost_estimate=cost,
    )(states2d, w1c, b1c, wh, bh)

    out = out[:M]
    w_abs = out[:, :N].reshape(B, T, N, 1)
    b = out[:, N:].reshape(B, T, 1, 1)
    return w_abs, b


def init_params(key, st_dim, n_agents, h_dim):
    """Deterministic synthetic parameters (Linear layers, stored as (in, out))."""
    K = st_dim * n_agents
    k1, k2, k3, k4, k5, k6 = jax.random.split(key, 6)
    w1 = jax.random.normal(k1, (K, h_dim), jnp.float32) * 0.1
    b1 = jax.random.normal(k2, (1, h_dim), jnp.float32) * 0.1
    w2 = jax.random.normal(k3, (h_dim, n_agents), jnp.float32) * 0.1
    b2 = jax.random.normal(k4, (1, n_agents), jnp.float32) * 0.1
    w3 = jax.random.normal(k5, (h_dim, 1), jnp.float32) * 0.1
    b3 = jax.random.normal(k6, (1, 1), jnp.float32) * 0.1
    return (w1, b1, w2, b2, w3, b3)


def mixnet_ref(states, params):
    """Pure-JAX f32 reference mirroring the PyTorch forward."""
    B, T, N, S = states.shape
    w1, b1, w2, b2, w3, b3 = params
    s2d = states.reshape(-1, N * S)
    x = jax.nn.relu(s2d @ w1 + b1)
    w = (x @ w2 + b2).reshape(B, T, N, 1)
    b = (x @ w3 + b3).reshape(B, T, 1, 1)
    return jnp.abs(w), b


if __name__ == "__main__":
    # Small shapes: batch=2, context_length=8, n_agents=4, st_dim=16, h_dim=32
    B, T, N, S, H = 2, 8, 4, 16, 32
    key = jax.random.PRNGKey(0)
    k_states, k_params = jax.random.split(key)
    states = jax.random.normal(k_states, (B, T, N, S), jnp.float32)
    params = init_params(k_params, S, N, H)

    w_ref, b_ref = mixnet_ref(states, params)

    # Default path: bf16 inputs/weights, f32 accumulation (HBM-traffic optimized).
    fwd_bf16 = jax.jit(functools.partial(mixnet_forward, compute_dtype=jnp.bfloat16))
    w_abs, b = fwd_bf16(states, params)
    w_abs = jax.block_until_ready(w_abs)
    b = jax.block_until_ready(b)
    assert w_abs.shape == (B, T, N, 1) and b.shape == (B, T, 1, 1)
    assert jnp.allclose(w_abs, w_ref, atol=5e-2, rtol=5e-2)
    assert jnp.allclose(b, b_ref, atol=5e-2, rtol=5e-2)

    # Full-precision path: exact match to the f32 reference.
    fwd_f32 = jax.jit(functools.partial(mixnet_forward, compute_dtype=jnp.float32))
    w_abs32, b32 = fwd_f32(states, params)
    w_abs32 = jax.block_until_ready(w_abs32)
    b32 = jax.block_until_ready(b32)
    assert jnp.allclose(w_abs32, w_ref, atol=1e-5, rtol=1e-5)
    assert jnp.allclose(b32, b_ref, atol=1e-5, rtol=1e-5)

    print("KERNEL_OK")
</pallas_src>

<mosaic_0001>
module attributes {stable_mosaic.version = 11 : i64} {
  func.func @mixnet_kernel(%arg0: i32, %arg1: memref<8x64xbf16, #tpu.memory_space<vmem>>, %arg2: memref<64x32xbf16, #tpu.memory_space<vmem>>, %arg3: memref<1x32xf32, #tpu.memory_space<vmem>>, %arg4: memref<32x5xbf16, #tpu.memory_space<vmem>>, %arg5: memref<1x5xf32, #tpu.memory_space<vmem>>, %arg6: memref<8x5xf32, #tpu.memory_space<vmem>>) attributes {dimension_semantics = [#tpu.dimension_semantics<parallel>], iteration_bounds = array<i64: 2>, scalar_prefetch = 0 : i64, scratch_operands = 0 : i64, tpu.core_type = #tpu.core_type<tc>, window_params = [{transform_indices = @transform_0, window_bounds = array<i64: 8, 64>}, {pipeline_mode = #tpu.pipeline_mode<synchronous>, transform_indices = @transform_1, window_bounds = array<i64: 64, 32>}, {pipeline_mode = #tpu.pipeline_mode<synchronous>, transform_indices = @transform_2, window_bounds = array<i64: 1, 32>}, {pipeline_mode = #tpu.pipeline_mode<synchronous>, transform_indices = @transform_3, window_bounds = array<i64: 32, 5>}, {pipeline_mode = #tpu.pipeline_mode<synchronous>, transform_indices = @transform_4, window_bounds = array<i64: 1, 5>}, {transform_indices = @transform_5, window_bounds = array<i64: 8, 5>}]} {
    %c0 = arith.constant 0 : index
    %c0_0 = arith.constant 0 : index
    %0 = vector.load %arg1[%c0, %c0_0] : memref<8x64xbf16, #tpu.memory_space<vmem>>, vector<8x64xbf16>
    %c0_1 = arith.constant 0 : index
    %c0_2 = arith.constant 0 : index
    %1 = vector.load %arg2[%c0_1, %c0_2] : memref<64x32xbf16, #tpu.memory_space<vmem>>, vector<64x32xbf16>
    %cst = arith.constant dense<0.000000e+00> : vector<8x32xf32>
    %2 = tpu.matmul %0, %1, %cst {dimension_numbers = #tpu.dot_dimension_numbers<[1], [0], [0], [1], [0, 0, 1, 1], [], []>} : vector<8x64xbf16>, vector<64x32xbf16>, vector<8x32xf32> -> vector<8x32xf32>
    %c0_3 = arith.constant 0 : index
    %c0_4 = arith.constant 0 : index
    %3 = vector.load %arg3[%c0_3, %c0_4] : memref<1x32xf32, #tpu.memory_space<vmem>>, vector<1x32xf32>
    %4 = vector.broadcast %3 : vector<1x32xf32> to vector<8x32xf32>
    %5 = arith.addf %2, %4 : vector<8x32xf32>
    %cst_5 = arith.constant 0.000000e+00 : f32
    %6 = vector.broadcast %cst_5 : f32 to vector<8x32xf32>
    %7 = arith.maximumf %5, %6 : vector<8x32xf32>
    %8 = arith.truncf %7 : vector<8x32xf32> to vector<8x32xbf16>
    %c0_6 = arith.constant 0 : index
    %c0_7 = arith.constant 0 : index
    %9 = vector.load %arg4[%c0_6, %c0_7] : memref<32x5xbf16, #tpu.memory_space<vmem>>, vector<32x5xbf16>
    %cst_8 = arith.constant dense<0.000000e+00> : vector<8x5xf32>
    %10 = tpu.matmul %8, %9, %cst_8 {dimension_numbers = #tpu.dot_dimension_numbers<[1], [0], [0], [1], [0, 0, 1, 1], [], []>} : vector<8x32xbf16>, vector<32x5xbf16>, vector<8x5xf32> -> vector<8x5xf32>
    %c0_9 = arith.constant 0 : index
    %c0_10 = arith.constant 0 : index
    %11 = vector.load %arg5[%c0_9, %c0_10] : memref<1x5xf32, #tpu.memory_space<vmem>>, vector<1x5xf32>
    %12 = vector.broadcast %11 : vector<1x5xf32> to vector<8x5xf32>
    %13 = arith.addf %10, %12 : vector<8x5xf32>
    %14 = tpu.iota {dimensions = array<i32: 1>} : vector<8x5xi32>
    %c4_i32 = arith.constant 4 : i32
    %15 = vector.broadcast %c4_i32 : i32 to vector<8x5xi32>
    %16 = arith.cmpi slt, %14, %15 : vector<8x5xi32>
    %17 = math.absf %13 : vector<8x5xf32>
    %18 = arith.select %16, %17, %13 : vector<8x5xi1>, vector<8x5xf32>
    %c0_11 = arith.constant 0 : index
    %c0_12 = arith.constant 0 : index
    %19 = vector.load %arg6[%c0_11, %c0_12] : memref<8x5xf32, #tpu.memory_space<vmem>>, vector<8x5xf32>
    tpu.vector_store %arg6[%c0_11, %c0_12], %18 {strides = array<i32>} : memref<8x5xf32, #tpu.memory_space<vmem>>, vector<8x5xf32>,
    return
  }
  func.func @transform_0(%arg0: i32) -> (i32, i32) {
    %c0_i32 = arith.constant 0 : i32
    %c0_i32_0 = arith.constant 0 : i32
    return %arg0, %c0_i32 : i32, i32
  }
  func.func @transform_1(%arg0: i32) -> (i32, i32) {
    %c0_i32 = arith.constant 0 : i32
    %c0_i32_0 = arith.constant 0 : i32
    %c0_i32_1 = arith.constant 0 : i32
    return %c0_i32, %c0_i32_0 : i32, i32
  }
  func.func @transform_2(%arg0: i32) -> (i32, i32) {
    %c0_i32 = arith.constant 0 : i32
    %c0_i32_0 = arith.constant 0 : i32
    %c0_i32_1 = arith.constant 0 : i32
    return %c0_i32, %c0_i32_0 : i32, i32
  }
  func.func @transform_3(%arg0: i32) -> (i32, i32) {
    %c0_i32 = arith.constant 0 : i32
    %c0_i32_0 = arith.constant 0 : i32
    %c0_i32_1 = arith.constant 0 : i32
    return %c0_i32, %c0_i32_0 : i32, i32
  }
  func.func @transform_4(%arg0: i32) -> (i32, i32) {
    %c0_i32 = arith.constant 0 : i32
    %c0_i32_0 = arith.constant 0 : i32
    %c0_i32_1 = arith.constant 0 : i32
    return %c0_i32, %c0_i32_0 : i32, i32
  }
  func.func @transform_5(%arg0: i32) -> (i32, i32) {
    %c0_i32 = arith.constant 0 : i32
    %c0_i32_0 = arith.constant 0 : i32
    return %arg0, %c0_i32 : i32, i32
  }
}

</mosaic_0001>

<llo_original>
// kernel: mixnet_forward.1
$region0: #{mixnet_forward.1}
  #allocation0 [shape = 'u32[]', space=smem, size = 0x4, offset = 0x4, fixed_abs, tag = 'smem constant byte address 0x4 - core index']
  #allocation1 [shape = 'u32[144,128]{1,0:T(1,128)}', space=vmem, size = 0x12000, scoped, tag = 'internal scratch']
  %s0 = inlined_call_operand.vmem [shape: bf16[16,64], index: 0, kind: input, shape index: {}]
  %s1 = inlined_call_operand.vmem [shape: bf16[64,32], index: 1, kind: input, shape index: {}]
  %s2 = inlined_call_operand.vmem [shape: f32[1,32], index: 2, kind: input, shape index: {}]
  %s3 = inlined_call_operand.vmem [shape: bf16[32,5], index: 3, kind: input, shape index: {}]
  %s4 = inlined_call_operand.vmem [shape: f32[1,5], index: 4, kind: input, shape index: {}]
  %s5 = inlined_call_operand.vmem [shape: f32[16,5], index: 5, kind: output, shape index: {}]
  %s6 = sld [smem:[#allocation0]]
  $region53: #{mixnet_forward.1} parent=0
    _
  %s8 = ssub.s32 1, %s6
  %s9 = scalar_select 0, %s8, %s6
  loop: start=0, step=1, limit=4
  $region2: #{mixnet_forward.1} parent=0 // loop_pre_header
    _
  $region3: #{mixnet_forward.1} parent=0 // loop_header
    %s11 = sphi 0, %s15
    %p12 = scmp.ge.s32.totalorder %s11, 4
    %s21 = sphi 0, %s23
    %s24 = sphi 0, %s21
    %s25 = sphi 0, %s24
    %s41 = sphi 0, %s25
    %s45 = sphi 0, %s45
    %s47 = sphi 0, %s45
    %s48 = sphi 0, %s47
    %s62 = sphi 0, %s48
    %s66 = sphi 0, %s66
    %s68 = sphi 0, %s66
    %s69 = sphi 0, %s68
    %s83 = sphi 0, %s69
    %s87 = sphi 0, %s87
    %s89 = sphi 0, %s87
    %s90 = sphi 0, %s89
    %s104 = sphi 0, %s90
    %s108 = sphi 0, %s108
    %s110 = sphi 0, %s108
    %s111 = sphi 0, %s110
    %s125 = sphi 0, %s111
    %s131 = sphi 0, %s133
    %s134 = sphi 0, %s131
    %s135 = sphi 0, %s134
    %s151 = sphi 0, %s135
  $region4: #{mixnet_forward.1} parent=0 // loop_header_branch
    %14 = sbr.rel (%p12) target = $region8
  $region5: #{mixnet_forward.1} parent=0 // loop_body
    %s16 = ssub.s32 %s11, 1
    %s17 = ssub.s32 %s11, 2
    %s18 = sadd.s32 %s11, 1
    %s19 = ssub.s32 %s11, %s18
    %p20 = scmp.eq.s32.totalorder %s19, 0
    %s22 = sadd.s32 %s21, 1
    %s23 = scalar_select %p20, %s21, %s22
    %p26 = pneg %p20
    %p27 = scmp.eq.s32.totalorder %s11, 1
    %p28 = por %p26, %p27
    %p29 = scmp.ne.s32.totalorder %s21, %s24
    %p30 = scmp.eq.s32.totalorder %s11, 0
    %p31 = por %p29, %p30
    %p32 = scmp.ne.s32.totalorder %s21, %s24
    %p33 = scmp.eq.s32.totalorder %s16, 1
    %p34 = por %p32, %p33
    %p35 = scmp.ne.s32.totalorder %s24, %s25
    %p36 = scmp.eq.s32.totalorder %s16, 0
    %p37 = por %p35, %p36
    %p38 = scmp.ne.s32.totalorder %s24, %s25
    %p39 = scmp.eq.s32.totalorder %s17, 1
    %p40 = por %p38, %p39
    %p42 = scmp.ne.s32.totalorder %s25, %s41
    %p43 = scmp.eq.s32.totalorder %s17, 0
    %p44 = por %p42, %p43
    %s46 = sadd.s32 %s45, 1
    %p49 = scmp.eq.s32.totalorder %s11, 1
    %p50 = scmp.ne.s32.totalorder %s45, %s47
    %p51 = scmp.eq.s32.totalorder %s11, 0
    %p52 = por %p50, %p51
    %p53 = scmp.ne.s32.totalorder %s45, %s47
    %p54 = scmp.eq.s32.totalorder %s16, 1
    %p55 = por %p53, %p54
    %p56 = scmp.ne.s32.totalorder %s47, %s48
    %p57 = scmp.eq.s32.totalorder %s16, 0
    %p58 = por %p56, %p57
    %p59 = scmp.ne.s32.totalorder %s47, %s48
    %p60 = scmp.eq.s32.totalorder %s17, 1
    %p61 = por %p59, %p60
    %p63 = scmp.ne.s32.totalorder %s48, %s62
    %p64 = scmp.eq.s32.totalorder %s17, 0
    %p65 = por %p63, %p64
    %s67 = sadd.s32 %s66, 1
    %p70 = scmp.eq.s32.totalorder %s11, 1
    %p71 = scmp.ne.s32.totalorder %s66, %s68
    %p72 = scmp.eq.s32.totalorder %s11, 0
    %p73 = por %p71, %p72
    %p74 = scmp.ne.s32.totalorder %s66, %s68
    %p75 = scmp.eq.s32.totalorder %s16, 1
    %p76 = por %p74, %p75
    %p77 = scmp.ne.s32.totalorder %s68, %s69
    %p78 = scmp.eq.s32.totalorder %s16, 0
    %p79 = por %p77, %p78
    %p80 = scmp.ne.s32.totalorder %s68, %s69
    %p81 = scmp.eq.s32.totalorder %s17, 1
    %p82 = por %p80, %p81
    %p84 = scmp.ne.s32.totalorder %s69, %s83
    %p85 = scmp.eq.s32.totalorder %s17, 0
    %p86 = por %p84, %p85
    %s88 = sadd.s32 %s87, 1
    %p91 = scmp.eq.s32.totalorder %s11, 1
    %p92 = scmp.ne.s32.totalorder %s87, %s89
    %p93 = scmp.eq.s32.totalorder %s11, 0
    %p94 = por %p92, %p93
    %p95 = scmp.ne.s32.totalorder %s87, %s89
    %p96 = scmp.eq.s32.totalorder %s16, 1
    %p97 = por %p95, %p96
    %p98 = scmp.ne.s32.totalorder %s89, %s90
    %p99 = scmp.eq.s32.totalorder %s16, 0
    %p100 = por %p98, %p99
    %p101 = scmp.ne.s32.totalorder %s89, %s90
    %p102 = scmp.eq.s32.totalorder %s17, 1
    %p103 = por %p101, %p102
    %p105 = scmp.ne.s32.totalorder %s90, %s104
    %p106 = scmp.eq.s32.totalorder %s17, 0
    %p107 = por %p105, %p106
    %s109 = sadd.s32 %s108, 1
    %p112 = scmp.eq.s32.totalorder %s11, 1
    %p113 = scmp.ne.s32.totalorder %s108, %s110
    %p114 = scmp.eq.s32.totalorder %s11, 0
    %p115 = por %p113, %p114
    %p116 = scmp.ne.s32.totalorder %s108, %s110
    %p117 = scmp.eq.s32.totalorder %s16, 1
    %p118 = por %p116, %p117
    %p119 = scmp.ne.s32.totalorder %s110, %s111
    %p120 = scmp.eq.s32.totalorder %s16, 0
    %p121 = por %p119, %p120
    %p122 = scmp.ne.s32.totalorder %s110, %s111
    %p123 = scmp.eq.s32.totalorder %s17, 1
    %p124 = por %p122, %p123
    %p126 = scmp.ne.s32.totalorder %s111, %s125
    %p127 = scmp.eq.s32.totalorder %s17, 0
    %p128 = por %p126, %p127
    %s129 = ssub.s32 %s11, %s18
    %p130 = scmp.eq.s32.totalorder %s129, 0
    %s132 = sadd.s32 %s131, 1
    %s133 = scalar_select %p130, %s131, %s132
    %p136 = pneg %p130
    %p137 = scmp.eq.s32.totalorder %s11, 1
    %p138 = por %p136, %p137
    %p139 = scmp.ne.s32.totalorder %s131, %s134
    %p140 = scmp.eq.s32.totalorder %s11, 0
    %p141 = por %p139, %p140
    %p142 = scmp.ne.s32.totalorder %s131, %s134
    %p143 = scmp.eq.s32.totalorder %s16, 1
    %p144 = por %p142, %p143
    %p145 = scmp.ne.s32.totalorder %s134, %s135
    %p146 = scmp.eq.s32.totalorder %s16, 0
    %p147 = por %p145, %p146
    %p148 = scmp.ne.s32.totalorder %s134, %s135
    %p149 = scmp.eq.s32.totalorder %s17, 1
    %p150 = por %p148, %p149
    %p152 = scmp.ne.s32.totalorder %s135, %s151
    %p153 = scmp.eq.s32.totalorder %s17, 0
    %p154 = por %p152, %p153
    %p155 = scmp.le.s32.totalorder 1, %s11
    %p156 = scmp.lt.s32.totalorder %s11, 3
    %p157 = pnand %p155, %p156
    %p158 = pneg %p157
    // Predicated region
    $region9: #{mixnet_forward.1} parent=5 // pred_check
      _
    $region10: #{mixnet_forward.1} parent=5 // pred_check_branch
      %160 = sbr.rel (%p157) target = $region12
    $region11: #{mixnet_forward.1} parent=5 // pred_region
      %s161 = ssub.s32 %s11, 1
      // Predicated region
      $region13: #{mixnet_forward.1} parent=11 // pred_check
        %p162 = pneg %p58
      $region14: #{mixnet_forward.1} parent=11 // pred_check_branch
        %164 = sbr.rel (%p162) target = $region16
      $region15: #{mixnet_forward.1} parent=11 // pred_region
        _
      $region16: #{mixnet_forward.1} parent=11 // pred_fallthru
        _
      // Predicated region
      $region17: #{mixnet_forward.1} parent=11 // pred_check
        %p165 = pneg %p79
      $region18: #{mixnet_forward.1} parent=11 // pred_check_branch
        %167 = sbr.rel (%p165) target = $region20
      $region19: #{mixnet_forward.1} parent=11 // pred_region
        _
      $region20: #{mixnet_forward.1} parent=11 // pred_fallthru
        _
      // Predicated region
      $region21: #{mixnet_forward.1} parent=11 // pred_check
        %p168 = pneg %p100
      $region22: #{mixnet_forward.1} parent=11 // pred_check_branch
        %170 = sbr.rel (%p168) target = $region24
      $region23: #{mixnet_forward.1} parent=11 // pred_region
        _
      $region24: #{mixnet_forward.1} parent=11 // pred_fallthru
        _
      // Predicated region
      $region25: #{mixnet_forward.1} parent=11 // pred_check
        %p171 = pneg %p121
      $region26: #{mixnet_forward.1} parent=11 // pred_check_branch
        %173 = sbr.rel (%p171) target = $region28
      $region27: #{mixnet_forward.1} parent=11 // pred_region
        _
      $region28: #{mixnet_forward.1} parent=11 // pred_fallthru
        _
    $region12: #{mixnet_forward.1} parent=5 // pred_fallthru
      _
    %p174 = scmp.lt.s32.totalorder %s11, 2
    // Predicated region
    $region29: #{mixnet_forward.1} parent=5 // pred_check
      %p175 = pneg %p174
    $region30: #{mixnet_forward.1} parent=5 // pred_check_branch
      %177 = sbr.rel (%p175) target = $region32
    $region31: #{mixnet_forward.1} parent=5 // pred_region
      // Predicated region
      $region33: #{mixnet_forward.1} parent=31 // pred_check
        %p178 = pneg %p31
      $region34: #{mixnet_forward.1} parent=31 // pred_check_branch
        %180 = sbr.rel (%p178) target = $region36
      $region35: #{mixnet_forward.1} parent=31 // pred_region
        %p181 = scmp.lt.s32.totalorder %s11, 1
        %s182 = scalar_select %p181, %s11, 1
        %s183 = smul.addr %s182, 4
        %s184 = scalar_lea.vmem %s0, %s183
      $region36: #{mixnet_forward.1} parent=31 // pred_fallthru
        _
    $region32: #{mixnet_forward.1} parent=5 // pred_fallthru
      _
    %p185 = scmp.le.s32.totalorder 1, %s11
    %p186 = scmp.lt.s32.totalorder %s11, 3
    %p187 = pnand %p185, %p186
    %p188 = pneg %p187
    // Predicated region
    $region37: #{mixnet_forward.1} parent=5 // pred_check
      _
    $region38: #{mixnet_forward.1} parent=5 // pred_check_branch
      %190 = sbr.rel (%p187) target = $region40
    $region39: #{mixnet_forward.1} parent=5 // pred_region
      %s191 = ssub.s32 %s11, 1
      %p192 = scmp.lt.s32.totalorder %s16, 1
      %s193 = scalar_select %p192, %s16, 1
      %s194 = smul.addr %s193, 4
      %s195 = scalar_lea.vmem %s0, %s194
      %p196 = pneg %p37
      %p197 = pneg %p34
      %p198 = pneg %p58
      %p199 = pneg %p55
      %p200 = pneg %p79
      %p201 = pneg %p76
      %p202 = pneg %p100
      %p203 = pneg %p97
      %p204 = pneg %p121
      %p205 = pneg %p118
      %p206 = pneg %p147
      %p207 = pneg %p144
      %p208 = scmp.lt.s32.totalorder %s16, 1
      %s209 = scalar_select %p208, %s16, 1
      %s210 = smul.addr %s209, 8
      %s211 = scalar_lea.vmem %s5, %s210
      %p212 = scmp.lt.s32.totalorder %s16, 1
      %s213 = scalar_select %p212, %s16, 1
      %s214 = smul.addr %s213, 4
      %s215 = scalar_lea.vmem %s0, %s214
      %p216 = scmp.lt.s32.totalorder %s16, 1
      %s217 = scalar_select %p216, %s16, 1
      %s218 = smul.addr %s217, 8
      %s219 = scalar_lea.vmem %s5, %s218
      %v221 = vld [vmem:[%s215] sm:$0xf]
      %v222 = vld [vmem:[%s1] sm:$0xf]
      %v223 = vld [vmem:[%s1 + $0x4] sm:$0xf]
      %v224 = vld [vmem:[%s1 + $0x8] sm:$0xf]
      %v225 = vld [vmem:[%s1 + $0xc] sm:$0xf]
      %v226 = vld [vmem:[%s1 + $0x10] sm:$0xf]
      %v227 = vld [vmem:[%s1 + $0x14] sm:$0xf]
      %v228 = vld [vmem:[%s1 + $0x18] sm:$0xf]
      %v229 = vld [vmem:[%s1 + $0x1c] sm:$0xf]
      %v230 = vld [vmem:[%s2] sm:$0x1]
      %v232 = vlaneseq
      %v233 = vshrl.u32 %v232, 7
      %v234 = vsub.s32 0, %v233
      %v235 = vrot.slane %v230, %v234
      %v245 = vunpack.c.l.b16 %v222
      %v246 = vunpack.c.l.b16 %v223
      %v247 = vunpack.c.l.b16 %v224
      %v248 = vunpack.c.l.b16 %v225
      %v249 = vunpack.c.l.b16 %v226
      %v250 = vunpack.c.l.b16 %v227
      %v251 = vunpack.c.l.b16 %v228
      %v252 = vunpack.c.l.b16 %v229
      %v253 = vpack.c.b16 %v246, %v245
      %v254 = vpack.c.b16 %v248, %v247
      %v255 = vpack.c.b16 %v250, %v249
      %v256 = vpack.c.b16 %v252, %v251
      %vm261 = vcmask 523264
      %v263 = vsel %vm261, %v221, 0
      %265 = vmatprep.subr.bf16.mxu0 0
      %266 = vmatpush1.bf16.msra.mxu0 %v253
      %267 = vmatprep.subr.bf16.mxu0 0
      %268 = vmatpush1.bf16.msra.mxu0 %v254
      %269 = vmatprep.subr.bf16.mxu0 0
      %270 = vmatpush1.bf16.msra.mxu0 %v255
      %271 = vmatprep.subr.bf16.mxu0 0
      %272 = vmatpush1.bf16.msra.mxu0 %v256
      %273 = vmatprep.subr.bf16.mxu0 0
      %274 = vmatpush1.bf16.msra.mxu0 0
      %275 = vmatprep.subr.bf16.mxu0 0
      %276 = vmatpush1.bf16.msra.mxu0 0
      %277 = vmatprep.subr.bf16.mxu0 0
      %278 = vmatpush1.bf16.msra.mxu0 0
      %279 = vmatprep.subr.bf16.mxu0 0
      %280 = vmatpush1.bf16.msra.mxu0 0
      %281 = vmatprep.subr.bf16.mxu0 0
      %282 = vmatpush1.bf16.msra.mxu0 0
      %283 = vmatprep.subr.bf16.mxu0 0
      %284 = vmatpush1.bf16.msra.mxu0 0
      %285 = vmatprep.subr.bf16.mxu0 0
      %286 = vmatpush1.bf16.msra.mxu0 0
      %287 = vmatprep.subr.bf16.mxu0 0
      %288 = vmatpush1.bf16.msra.mxu0 0
      %289 = vmatprep.subr.bf16.mxu0 0
      %290 = vmatpush1.bf16.msra.mxu0 0
      %291 = vmatprep.subr.bf16.mxu0 0
      %292 = vmatpush1.bf16.msra.mxu0 0
      %293 = vmatprep.subr.bf16.mxu0 0
      %294 = vmatpush1.bf16.msra.mxu0 0
      %295 = vmatprep.subr.bf16.mxu0 0
      %296 = vmatpush1.bf16.msra.mxu0 0
      %297 = vmatprep.mubr.bf16.mxu0 0
      %298 = vmatmul.mubr.bf16.gmra.mrb[0].mxu0 %v263
      %v299 = vpop.f32.mrb[0].mxu0
      %v300 = vadd.f32 %v235, %v299
      %v301 = vpop.f32.mrb[0].mxu0
      %v302 = vpop.f32.mrb[0].mxu0
      %v303 = vpop.f32.mrb[0].mxu0
      %304 = vdwg.mxu0
      %v305 = vmax.f32 %v300, 0.0
      %v306 = vpack.c.bf16 %v305, %v305
      %v307 = vld [vmem:[%s3] sm:$0xf]
      %v308 = vld [vmem:[%s3 + $0x4] sm:$0xf]
      %v309 = vld [vmem:[%s3 + $0x8] sm:$0xf]
      %v310 = vld [vmem:[%s3 + $0xc] sm:$0xf]
      %v311 = vld [vmem:[%s4] sm:$0x1]
      %v313 = vlaneseq
      %v314 = vshrl.u32 %v313, 7
      %v315 = vsub.s32 0, %v314
      %v316 = vrot.slane %v311, %v315
      %v322 = vunpack.c.l.b16 %v307
      %v323 = vunpack.c.l.b16 %v308
      %v324 = vunpack.c.l.b16 %v309
      %v325 = vunpack.c.l.b16 %v310
      %v326 = vpack.c.b16 %v323, %v322
      %v327 = vpack.c.b16 %v325, %v324
      %vm330 = vcmask 261120
      %v332 = vsel %vm330, %v306, 0
      %334 = vmatprep.subr.bf16.mxu0 0
      %335 = vmatpush1.bf16.msra.mxu0 %v326
      %336 = vmatprep.subr.bf16.mxu0 0
      %337 = vmatpush1.bf16.msra.mxu0 %v327
      %338 = vmatprep.subr.bf16.mxu0 0
      %339 = vmatpush1.bf16.msra.mxu0 0
      %340 = vmatprep.subr.bf16.mxu0 0
      %341 = vmatpush1.bf16.msra.mxu0 0
      %342 = vmatprep.subr.bf16.mxu0 0
      %343 = vmatpush1.bf16.msra.mxu0 0
      %344 = vmatprep.subr.bf16.mxu0 0
      %345 = vmatpush1.bf16.msra.mxu0 0
      %346 = vmatprep.subr.bf16.mxu0 0
      %347 = vmatpush1.bf16.msra.mxu0 0
      %348 = vmatprep.subr.bf16.mxu0 0
      %349 = vmatpush1.bf16.msra.mxu0 0
      %350 = vmatprep.subr.bf16.mxu0 0
      %351 = vmatpush1.bf16.msra.mxu0 0
      %352 = vmatprep.subr.bf16.mxu0 0
      %353 = vmatpush1.bf16.msra.mxu0 0
      %354 = vmatprep.subr.bf16.mxu0 0
      %355 = vmatpush1.bf16.msra.mxu0 0
      %356 = vmatprep.subr.bf16.mxu0 0
      %357 = vmatpush1.bf16.msra.mxu0 0
      %358 = vmatprep.subr.bf16.mxu0 0
      %359 = vmatpush1.bf16.msra.mxu0 0
      %360 = vmatprep.subr.bf16.mxu0 0
      %361 = vmatpush1.bf16.msra.mxu0 0
      %362 = vmatprep.subr.bf16.mxu0 0
      %363 = vmatpush1.bf16.msra.mxu0 0
      %364 = vmatprep.subr.bf16.mxu0 0
      %365 = vmatpush1.bf16.msra.mxu0 0
      %366 = vmatprep.mubr.bf16.mxu0 0
      %367 = vmatmul.mubr.bf16.gmra.mrb[0].mxu0 %v332
      %v368 = vpop.f32.mrb[0].mxu0
      %v369 = vadd.f32 %v316, %v368
      %v370 = vpop.f32.mrb[0].mxu0
      %v371 = vpop.f32.mrb[0].mxu0
      %v372 = vpop.f32.mrb[0].mxu0
      %373 = vdwg.mxu0
      %v374 = vlaneseq
      %v375 = vand.u32 %v374, 127
      %vm376 = vcmp.lt.s32.totalorder %v375, 4
      %v377 = vand.u32 2147483647, %v369
      %v378 = vsel %vm376, %v377, %v369
      %vm379 = vcmask 39936
      %380 = vst.msk [vmem:[%s219] sm:$0xff] %vm379, %v378
      %p381 = scmp.lt.s32.totalorder %s16, 1
      %s382 = scalar_select %p381, %s16, 1
      %s383 = smul.addr %s382, 8
      %s384 = scalar_lea.vmem %s5, %s383
      // Predicated region
      $region41: #{mixnet_forward.1} parent=39 // pred_check
        %p385 = pneg %p144
      $region42: #{mixnet_forward.1} parent=39 // pred_check_branch
        %387 = sbr.rel (%p385) target = $region44
      $region43: #{mixnet_forward.1} parent=39 // pred_region
        _
      $region44: #{mixnet_forward.1} parent=39 // pred_fallthru
        _
    $region40: #{mixnet_forward.1} parent=5 // pred_fallthru
      _
    %p388 = scmp.le.s32.totalorder 2, %s11
    // Predicated region
    $region45: #{mixnet_forward.1} parent=5 // pred_check
      %p389 = pneg %p388
    $region46: #{mixnet_forward.1} parent=5 // pred_check_branch
      %391 = sbr.rel (%p389) target = $region48
    $region47: #{mixnet_forward.1} parent=5 // pred_region
      %s392 = ssub.s32 %s11, 2
      // Predicated region
      $region49: #{mixnet_forward.1} parent=47 // pred_check
        %p393 = pneg %p150
      $region50: #{mixnet_forward.1} parent=47 // pred_check_branch
        %395 = sbr.rel (%p393) target = $region52
      $region51: #{mixnet_forward.1} parent=47 // pred_region
        %p396 = scmp.lt.s32.totalorder %s17, 1
        %s397 = scalar_select %p396, %s17, 1
        %s398 = smul.addr %s397, 8
        %s399 = scalar_lea.vmem %s5, %s398
      $region52: #{mixnet_forward.1} parent=47 // pred_fallthru
        _
    $region48: #{mixnet_forward.1} parent=5 // pred_fallthru
      _
  $region6: #{mixnet_forward.1} parent=0 // loop_footer
    %s15 = sadd.s32 1, %s11
  $region7: #{mixnet_forward.1} parent=0 // loop_footer_branch
    %10 = sbr.rel target = $region3
  $region8: #{mixnet_forward.1} parent=0 // loop_exit
    _

</llo_original>
